<compile_context>
chip_gen: v7x
topology: tpu7x:2x2x1
jax: 0.10.0
libtpu: 0.0.40
codegen_flags: <defaults>
</compile_context>

<pallas_src>
import jax
import jax.numpy as jnp
from jax.experimental import pallas as pl
from jax.experimental.pallas import tpu as pltpu


def _round_up(x, m):
    return (x + m - 1) // m * m


def _cdiv(a, b):
    return (a + b - 1) // b


def _critic_kernel(x_ref, w1_ref, b1_ref, w2_ref, b2_ref,
                   w3_ref, b3_ref, w4_ref, b4_ref, o_ref):
    # Layer 1: one bf16 MXU matmul over the zero-padded concat(state, action).
    # (x and W1 are both zero-padded on the K axis, so padding adds exact 0.)
    h = jnp.dot(x_ref[...], w1_ref[...], preferred_element_type=jnp.float32)
    h = jnp.maximum(h + b1_ref[...], 0.0)

    # Layers 2 & 3: bf16 operands, f32 accumulation on the MXU.
    h = jnp.dot(h.astype(jnp.bfloat16), w2_ref[...],
                preferred_element_type=jnp.float32)
    h = jnp.maximum(h + b2_ref[...], 0.0)

    h = jnp.dot(h.astype(jnp.bfloat16), w3_ref[...],
                preferred_element_type=jnp.float32)
    h = jnp.maximum(h + b3_ref[...], 0.0)

    # Output head (out_features == 1): VPU multiply + lane reduce instead of a
    # nearly empty MXU pass.  Stored lane-dense: o_ref is (1, 1, TB) with the
    # batch tile on the lane dimension (TB is a multiple of 128 -> unmasked vst).
    # TODO(synk): sublane->lane relayout of q may cost an XLU pass per tile;
    # expected to be absorbed by idle XLU slots (kernel is MXU-bound).
    q = jnp.sum(h * w4_ref[...], axis=-1) + b4_ref[0]   # (TB,)
    o_ref[...] = q.reshape(o_ref.shape)


def prepare_critic_params(params, state_dim, action_dim):
    """One-time weight preprocessing, hoisted out of the per-call forward.

    Pads W1 to a 64-row bf16 matrix (zero rows for the padded input lanes),
    casts the 256x256 weights to bf16 and reshapes biases.  Call once; pass
    the returned dict to critic_forward.
    """
    (w1, b1), (w2, b2), (w3, b3), (w4, b4) = params
    in_dim = state_dim + action_dim
    hidden = w2.shape[0]
    k_pad = _round_up(in_dim, 64)
    w1p = jnp.pad(w1, ((0, k_pad - in_dim), (0, 0))).astype(jnp.bfloat16)
    return dict(
        w1=w1p,                                         # (k_pad, 256) bf16
        b1=b1.reshape(1, hidden).astype(jnp.float32),
        w2=w2.astype(jnp.bfloat16),                     # (256, 256) bf16
        b2=b2.reshape(1, hidden).astype(jnp.float32),
        w3=w3.astype(jnp.bfloat16),                     # (256, 256) bf16
        b3=b3.reshape(1, hidden).astype(jnp.float32),
        w4=w4.reshape(1, hidden).astype(jnp.float32),   # (1, 256) f32, VPU head
        b4=b4.reshape(1).astype(jnp.float32),           # scalar bias -> SMEM
    )


def critic_forward(state, action, prepped, *, block_b=1024):
    """Equivalent of Critic.forward(state, action) -> shape (B,)."""
    B, S = state.shape
    A = action.shape[-1]
    w1 = prepped["w1"]
    K_pad = w1.shape[0]          # padded concat width (static under jit)
    assert S + A <= K_pad

    # Lane-dense batch tiling: TB is always a multiple of 128.  For B > 128,
    # pick TB so n_tiles >= 2 (even TensorCore occupancy on v7x), capped at
    # block_b (default 1024) to amortize per-grid-step overhead while keeping
    # per-tile scratch well under v7x's scoped VMEM.
    B128 = _round_up(B, 128)
    if B128 <= 128:
        TB = 128
    else:
        TB = min(block_b, _round_up(_cdiv(B128, 2), 128))
    B_pad = _round_up(B, TB)
    n_tiles = B_pad // TB

    # Fused concat + zero-pad + bf16 cast for the single layer-1 matmul.
    # Zero padding (not uninitialized memory) times the zero weight rows of
    # the padded W1 contributes exactly 0.
    x = jnp.concatenate([state, action], axis=-1)
    x = jnp.pad(x, ((0, B_pad - B), (0, K_pad - (S + A)))).astype(jnp.bfloat16)

    def const(arr):
        nd = arr.ndim
        return pl.BlockSpec(arr.shape, lambda i, _nd=nd: (0,) * _nd)

    out = pl.pallas_call(
        _critic_kernel,
        out_shape=jax.ShapeDtypeStruct((n_tiles, 1, TB), jnp.float32),
        grid=(n_tiles,),
        in_specs=[
            pl.BlockSpec((TB, K_pad), lambda i: (i, 0)),        # x tile
            const(prepped["w1"]), const(prepped["b1"]),
            const(prepped["w2"]), const(prepped["b2"]),
            const(prepped["w3"]), const(prepped["b3"]),
            const(prepped["w4"]),
            pl.BlockSpec(memory_space=pltpu.MemorySpace.SMEM),  # b4 scalar
        ],
        out_specs=pl.BlockSpec((1, 1, TB), lambda i: (i, 0, 0)),
        compiler_params=pltpu.CompilerParams(
            dimension_semantics=("parallel",)),
    )(x, prepped["w1"], prepped["b1"], prepped["w2"], prepped["b2"],
      prepped["w3"], prepped["b3"], prepped["w4"], prepped["b4"])

    return out.reshape(-1)[:B]  # .view(-1), dropping batch padding


def init_critic_params(key, state_dim, action_dim, hidden=256):
    """Deterministic synthetic parameters (PyTorch-like uniform fan-in init).

    Weights are stored as (in_features, out_features), i.e. the transpose of
    PyTorch's nn.Linear layout, so the kernel computes x @ W + b directly.
    """
    in_dim = state_dim + action_dim
    dims = [(in_dim, hidden), (hidden, hidden), (hidden, hidden), (hidden, 1)]
    params = []
    for (fan_in, fan_out) in dims:
        key, kw, kb = jax.random.split(key, 3)
        bound = 1.0 / jnp.sqrt(fan_in)
        w = jax.random.uniform(kw, (fan_in, fan_out), jnp.float32, -bound, bound)
        b = jax.random.uniform(kb, (1, fan_out), jnp.float32, -bound, bound)
        params.append((w, b))
    return params


def _reference_forward(state, action, params):
    """Plain-JAX f32 reference matching the PyTorch module."""
    x = jnp.concatenate([state, action], axis=-1)
    (w1, b1), (w2, b2), (w3, b3), (w4, b4) = params
    h = jnp.maximum(x @ w1 + b1, 0.0)
    h = jnp.maximum(h @ w2 + b2, 0.0)
    h = jnp.maximum(h @ w3 + b3, 0.0)
    return (h @ w4 + b4).reshape(-1)


if __name__ == "__main__":
    key = jax.random.PRNGKey(0)
    k_params, k_state, k_action = jax.random.split(key, 3)

    state_dim, action_dim, batch = 28, 8, 8  # Ant-like dims, small batch
    params = init_critic_params(k_params, state_dim, action_dim)
    prepped = prepare_critic_params(params, state_dim, action_dim)  # once

    state = jax.random.normal(k_state, (batch, state_dim), jnp.float32)
    action = jax.random.normal(k_action, (batch, action_dim), jnp.float32)

    q = jax.jit(critic_forward)(state, action, prepped)
    q = jax.block_until_ready(q)

    q_ref = _reference_forward(state, action, params)
    assert q.shape == (batch,)
    # Loose tolerance: all three hidden layers use bf16 weights/activations
    # with f32 accumulation.
    assert jnp.allclose(q, q_ref, atol=5e-2, rtol=5e-2), (q, q_ref)

    print("KERNEL_OK")
</pallas_src>

<mosaic_0001>
module attributes {stable_mosaic.version = 11 : i64} {
  func.func @_critic_kernel(%arg0: i32, %arg1: memref<128x64xbf16, #tpu.memory_space<vmem>>, %arg2: memref<64x256xbf16, #tpu.memory_space<vmem>>, %arg3: memref<1x256xf32, #tpu.memory_space<vmem>>, %arg4: memref<256x256xbf16, #tpu.memory_space<vmem>>, %arg5: memref<1x256xf32, #tpu.memory_space<vmem>>, %arg6: memref<256x256xbf16, #tpu.memory_space<vmem>>, %arg7: memref<1x256xf32, #tpu.memory_space<vmem>>, %arg8: memref<1x256xf32, #tpu.memory_space<vmem>>, %arg9: memref<1xf32, #tpu.memory_space<smem>>, %arg10: memref<1x1x128xf32, #tpu.memory_space<vmem>>) attributes {dimension_semantics = [#tpu.dimension_semantics<parallel>], iteration_bounds = array<i64: 1>, scalar_prefetch = 0 : i64, scratch_operands = 0 : i64, tpu.core_type = #tpu.core_type<tc>, window_params = [{transform_indices = @transform_0, window_bounds = array<i64: 128, 64>}, {pipeline_mode = #tpu.pipeline_mode<synchronous>, transform_indices = @transform_1, window_bounds = array<i64: 64, 256>}, {pipeline_mode = #tpu.pipeline_mode<synchronous>, transform_indices = @transform_2, window_bounds = array<i64: 1, 256>}, {pipeline_mode = #tpu.pipeline_mode<synchronous>, transform_indices = @transform_3, window_bounds = array<i64: 256, 256>}, {pipeline_mode = #tpu.pipeline_mode<synchronous>, transform_indices = @transform_4, window_bounds = array<i64: 1, 256>}, {pipeline_mode = #tpu.pipeline_mode<synchronous>, transform_indices = @transform_5, window_bounds = array<i64: 256, 256>}, {pipeline_mode = #tpu.pipeline_mode<synchronous>, transform_indices = @transform_6, window_bounds = array<i64: 1, 256>}, {pipeline_mode = #tpu.pipeline_mode<synchronous>, transform_indices = @transform_7, window_bounds = array<i64: 1, 256>}, {transform_indices = @transform_8, window_bounds = array<i64: 1>}, {transform_indices = @transform_9, window_bounds = array<i64: 1, 1, 128>}]} {
    %c0 = arith.constant 0 : index
    %c0_0 = arith.constant 0 : index
    %0 = vector.load %arg1[%c0, %c0_0] : memref<128x64xbf16, #tpu.memory_space<vmem>>, vector<128x64xbf16>
    %c0_1 = arith.constant 0 : index
    %c0_2 = arith.constant 0 : index
    %1 = vector.load %arg2[%c0_1, %c0_2] : memref<64x256xbf16, #tpu.memory_space<vmem>>, vector<64x256xbf16>
    %cst = arith.constant dense<0.000000e+00> : vector<128x256xf32>
    %2 = tpu.matmul %0, %1, %cst {dimension_numbers = #tpu.dot_dimension_numbers<[1], [0], [0], [1], [0, 0, 1, 1], [], []>} : vector<128x64xbf16>, vector<64x256xbf16>, vector<128x256xf32> -> vector<128x256xf32>
    %c0_3 = arith.constant 0 : index
    %c0_4 = arith.constant 0 : index
    %3 = vector.load %arg3[%c0_3, %c0_4] : memref<1x256xf32, #tpu.memory_space<vmem>>, vector<1x256xf32>
    %4 = vector.broadcast %3 : vector<1x256xf32> to vector<128x256xf32>
    %5 = arith.addf %2, %4 : vector<128x256xf32>
    %cst_5 = arith.constant 0.000000e+00 : f32
    %6 = vector.broadcast %cst_5 : f32 to vector<128x256xf32>
    %7 = arith.maximumf %5, %6 : vector<128x256xf32>
    %8 = arith.truncf %7 : vector<128x256xf32> to vector<128x256xbf16>
    %c0_6 = arith.constant 0 : index
    %c0_7 = arith.constant 0 : index
    %9 = vector.load %arg4[%c0_6, %c0_7] : memref<256x256xbf16, #tpu.memory_space<vmem>>, vector<256x256xbf16>
    %cst_8 = arith.constant dense<0.000000e+00> : vector<128x256xf32>
    %10 = tpu.matmul %8, %9, %cst_8 {dimension_numbers = #tpu.dot_dimension_numbers<[1], [0], [0], [1], [0, 0, 1, 1], [], []>} : vector<128x256xbf16>, vector<256x256xbf16>, vector<128x256xf32> -> vector<128x256xf32>
    %c0_9 = arith.constant 0 : index
    %c0_10 = arith.constant 0 : index
    %11 = vector.load %arg5[%c0_9, %c0_10] : memref<1x256xf32, #tpu.memory_space<vmem>>, vector<1x256xf32>
    %12 = vector.broadcast %11 : vector<1x256xf32> to vector<128x256xf32>
    %13 = arith.addf %10, %12 : vector<128x256xf32>
    %cst_11 = arith.constant 0.000000e+00 : f32
    %14 = vector.broadcast %cst_11 : f32 to vector<128x256xf32>
    %15 = arith.maximumf %13, %14 : vector<128x256xf32>
    %16 = arith.truncf %15 : vector<128x256xf32> to vector<128x256xbf16>
    %c0_12 = arith.constant 0 : index
    %c0_13 = arith.constant 0 : index
    %17 = vector.load %arg6[%c0_12, %c0_13] : memref<256x256xbf16, #tpu.memory_space<vmem>>, vector<256x256xbf16>
    %cst_14 = arith.constant dense<0.000000e+00> : vector<128x256xf32>
    %18 = tpu.matmul %16, %17, %cst_14 {dimension_numbers = #tpu.dot_dimension_numbers<[1], [0], [0], [1], [0, 0, 1, 1], [], []>} : vector<128x256xbf16>, vector<256x256xbf16>, vector<128x256xf32> -> vector<128x256xf32>
    %c0_15 = arith.constant 0 : index
    %c0_16 = arith.constant 0 : index
    %19 = vector.load %arg7[%c0_15, %c0_16] : memref<1x256xf32, #tpu.memory_space<vmem>>, vector<1x256xf32>
    %20 = vector.broadcast %19 : vector<1x256xf32> to vector<128x256xf32>
    %21 = arith.addf %18, %20 : vector<128x256xf32>
    %cst_17 = arith.constant 0.000000e+00 : f32
    %22 = vector.broadcast %cst_17 : f32 to vector<128x256xf32>
    %23 = arith.maximumf %21, %22 : vector<128x256xf32>
    %c0_18 = arith.constant 0 : index
    %c0_19 = arith.constant 0 : index
    %24 = vector.load %arg8[%c0_18, %c0_19] : memref<1x256xf32, #tpu.memory_space<vmem>>, vector<1x256xf32>
    %25 = vector.broadcast %24 : vector<1x256xf32> to vector<128x256xf32>
    %26 = arith.mulf %23, %25 : vector<128x256xf32>
    %cst_20 = arith.constant dense<0.000000e+00> : vector<128xf32>
    %27 = vector.multi_reduction <add>, %26, %cst_20 [1] : vector<128x256xf32> to vector<128xf32>
    %c0_21 = arith.constant 0 : index
    %28 = memref.load %arg9[%c0_21] : memref<1xf32, #tpu.memory_space<smem>>
    %29 = vector.broadcast %28 : f32 to vector<128xf32>
    %30 = arith.addf %27, %29 : vector<128xf32>
    %31 = vector.shape_cast %30 : vector<128xf32> to vector<1x1x128xf32>
    %c0_22 = arith.constant 0 : index
    %c0_23 = arith.constant 0 : index
    %c0_24 = arith.constant 0 : index
    %32 = vector.load %arg10[%c0_22, %c0_23, %c0_24] : memref<1x1x128xf32, #tpu.memory_space<vmem>>, vector<1x1x128xf32>
    tpu.vector_store %arg10[%c0_22, %c0_23, %c0_24], %31 {strides = array<i32>} : memref<1x1x128xf32, #tpu.memory_space<vmem>>, vector<1x1x128xf32>,
    return
  }
  func.func @transform_0(%arg0: i32) -> (i32, i32) {
    %c0_i32 = arith.constant 0 : i32
    %c0_i32_0 = arith.constant 0 : i32
    return %arg0, %c0_i32 : i32, i32
  }
  func.func @transform_1(%arg0: i32) -> (i32, i32) {
    %c0_i32 = arith.constant 0 : i32
    %c0_i32_0 = arith.constant 0 : i32
    %c0_i32_1 = arith.constant 0 : i32
    return %c0_i32, %c0_i32_0 : i32, i32
  }
  func.func @transform_2(%arg0: i32) -> (i32, i32) {
    %c0_i32 = arith.constant 0 : i32
    %c0_i32_0 = arith.constant 0 : i32
    %c0_i32_1 = arith.constant 0 : i32
    return %c0_i32, %c0_i32_0 : i32, i32
  }
  func.func @transform_3(%arg0: i32) -> (i32, i32) {
    %c0_i32 = arith.constant 0 : i32
    %c0_i32_0 = arith.constant 0 : i32
    %c0_i32_1 = arith.constant 0 : i32
    return %c0_i32, %c0_i32_0 : i32, i32
  }
  func.func @transform_4(%arg0: i32) -> (i32, i32) {
    %c0_i32 = arith.constant 0 : i32
    %c0_i32_0 = arith.constant 0 : i32
    %c0_i32_1 = arith.constant 0 : i32
    return %c0_i32, %c0_i32_0 : i32, i32
  }
  func.func @transform_5(%arg0: i32) -> (i32, i32) {
    %c0_i32 = arith.constant 0 : i32
    %c0_i32_0 = arith.constant 0 : i32
    %c0_i32_1 = arith.constant 0 : i32
    return %c0_i32, %c0_i32_0 : i32, i32
  }
  func.func @transform_6(%arg0: i32) -> (i32, i32) {
    %c0_i32 = arith.constant 0 : i32
    %c0_i32_0 = arith.constant 0 : i32
    %c0_i32_1 = arith.constant 0 : i32
    return %c0_i32, %c0_i32_0 : i32, i32
  }
  func.func @transform_7(%arg0: i32) -> (i32, i32) {
    %c0_i32 = arith.constant 0 : i32
    %c0_i32_0 = arith.constant 0 : i32
    %c0_i32_1 = arith.constant 0 : i32
    return %c0_i32, %c0_i32_0 : i32, i32
  }
  func.func @transform_8(%arg0: i32) -> i32 {
    %c0_i32 = arith.constant 0 : i32
    %c0_i32_0 = arith.constant 0 : i32
    return %c0_i32 : i32
  }
  func.func @transform_9(%arg0: i32) -> (i32, i32, i32) {
    %c0_i32 = arith.constant 0 : i32
    %c0_i32_0 = arith.constant 0 : i32
    %c0_i32_1 = arith.constant 0 : i32
    return %arg0, %c0_i32, %c0_i32_0 : i32, i32, i32
  }
}

</mosaic_0001>

<llo_original>
// kernel: critic_forward.1
$region0: #{critic_forward.1}
  #allocation0 [shape = 'u32[]', space=smem, size = 0x4, offset = 0x4, fixed_abs, tag = 'smem constant byte address 0x4 - core index']
  #allocation1 [shape = 'u32[144,128]{1,0:T(1,128)}', space=vmem, size = 0x12000, scoped, tag = 'internal scratch']
  #allocation2 [shape = 'f32[1]{0:T(128)S(6)}', space=smem, size = 0x200, scoped, tag = 'scoped memory for critic_forward.1']
  %s0 = inlined_call_operand.vmem [shape: bf16[128,64], index: 0, kind: input, shape index: {}]
  %s1 = inlined_call_operand.vmem [shape: bf16[64,256], index: 1, kind: input, shape index: {}]
  %s2 = inlined_call_operand.vmem [shape: f32[1,256], index: 2, kind: input, shape index: {}]
  %s3 = inlined_call_operand.hbm [shape: bf16[256,256], index: 3, kind: input, shape index: {}]
  %s4 = inlined_call_operand.vmem [shape: f32[1,256], index: 4, kind: input, shape index: {}]
  %s5 = inlined_call_operand.hbm [shape: bf16[256,256], index: 5, kind: input, shape index: {}]
  %s6 = inlined_call_operand.vmem [shape: f32[1,256], index: 6, kind: input, shape index: {}]
  %s7 = inlined_call_operand.vmem [shape: f32[1,256], index: 7, kind: input, shape index: {}]
  %s8 = inlined_call_operand.<no memory space> [shape: f32[1], index: 8, kind: input, shape index: {}]
  %s9 = inlined_call_operand.vmem [shape: f32[1,1,128], index: 9, kind: output, shape index: {}]
  %s10 = sld [smem:[#allocation0]]
  $region54: #{critic_forward.1} parent=0
    _
  %s12 = ssub.s32 1, %s10
  %s13 = scalar_select 0, %s12, %s10
  %14 = sst [smem:[#allocation2]] %s8
  $region1: #{critic_forward.1} parent=0
    #allocation3 [shape = 'u8[131072]{0}', space=vmem, size = 0x20000, scoped, tag = 'input window, operand 3, single buffered']
    #allocation4 [shape = 's32[1]{0}', space=sflag, size = 0x4, scoped, tag = 'scoped memory for critic_forward.1']
    #allocation5 [shape = 'u8[131072]{0}', space=vmem, size = 0x20000, scoped, tag = 'input window, operand 5, single buffered']
    #allocation6 [shape = 's32[1]{0}', space=sflag, size = 0x4, scoped, tag = 'scoped memory for critic_forward.1']
    %15 = vsyncpa [#allocation4], 0
    %16 = vsyncpa [#allocation6], 0
    // Predicated region
    $region2: #{critic_forward.1} parent=1 // pred_check
      _
    $region3: #{critic_forward.1} parent=1 // pred_check_branch
      %18 = sbr.rel (0) target = $region5
    $region4: #{critic_forward.1} parent=1 // pred_region
      _
    $region5: #{critic_forward.1} parent=1 // pred_fallthru
      _
    // Predicated region
    $region6: #{critic_forward.1} parent=1 // pred_check
      _
    $region7: #{critic_forward.1} parent=1 // pred_check_branch
      %20 = sbr.rel (0) target = $region9
    $region8: #{critic_forward.1} parent=1 // pred_region
      _
    $region9: #{critic_forward.1} parent=1 // pred_fallthru
      _
    // Predicated region
    $region10: #{critic_forward.1} parent=1 // pred_check
      _
    $region11: #{critic_forward.1} parent=1 // pred_check_branch
      %22 = sbr.rel (0) target = $region13
    $region12: #{critic_forward.1} parent=1 // pred_region
      _
    $region13: #{critic_forward.1} parent=1 // pred_fallthru
      _
    // Predicated region
    $region14: #{critic_forward.1} parent=1 // pred_check
      _
    $region15: #{critic_forward.1} parent=1 // pred_check_branch
      %24 = sbr.rel (0) target = $region17
    $region16: #{critic_forward.1} parent=1 // pred_region
      %s26 = ssub.s32 4096, 4096
      %27 = vsyncadd [#allocation4], %s26
      %s28 = sshll.u32 [#allocation3], 4
      %s29 = int_to_ptr.vmem [resolvable:$true] %s28
      %34 = dma.hbm_to_vmem [thread:$0]  %s3, 4096, %s29, [#allocation4], 128, 128, 8
    $region17: #{critic_forward.1} parent=1 // pred_fallthru
      _
    // Predicated region
    $region18: #{critic_forward.1} parent=1 // pred_check
      _
    $region19: #{critic_forward.1} parent=1 // pred_check_branch
      %36 = sbr.rel (0) target = $region21
    $region20: #{critic_forward.1} parent=1 // pred_region
      _
    $region21: #{critic_forward.1} parent=1 // pred_fallthru
      _
    // Predicated region
    $region22: #{critic_forward.1} parent=1 // pred_check
      _
    $region23: #{critic_forward.1} parent=1 // pred_check_branch
      %38 = sbr.rel (0) target = $region25
    $region24: #{critic_forward.1} parent=1 // pred_region
      %s40 = ssub.s32 4096, 4096
      %41 = vsyncadd [#allocation6], %s40
      %s42 = sshll.u32 [#allocation5], 4
      %s43 = int_to_ptr.vmem [resolvable:$true] %s42
      %48 = dma.hbm_to_vmem [thread:$0]  %s5, 4096, %s43, [#allocation6], 128, 128, 8
    $region25: #{critic_forward.1} parent=1 // pred_fallthru
      _
    // Predicated region
    $region26: #{critic_forward.1} parent=1 // pred_check
      _
    $region27: #{critic_forward.1} parent=1 // pred_check_branch
      %50 = sbr.rel (0) target = $region29
    $region28: #{critic_forward.1} parent=1 // pred_region
      _
    $region29: #{critic_forward.1} parent=1 // pred_fallthru
      _
    // Predicated region
    $region30: #{critic_forward.1} parent=1 // pred_check
      _
    $region31: #{critic_forward.1} parent=1 // pred_check_branch
      %52 = sbr.rel (0) target = $region33
    $region32: #{critic_forward.1} parent=1 // pred_region
      _
    $region33: #{critic_forward.1} parent=1 // pred_fallthru
      _
    // Predicated region
    $region34: #{critic_forward.1} parent=1 // pred_check
      _
    $region35: #{critic_forward.1} parent=1 // pred_check_branch
      %54 = sbr.rel (0) target = $region37
    $region36: #{critic_forward.1} parent=1 // pred_region
      _
    $region37: #{critic_forward.1} parent=1 // pred_fallthru
      _
    // Predicated region
    $region38: #{critic_forward.1} parent=1 // pred_check
      _
    $region39: #{critic_forward.1} parent=1 // pred_check_branch
      %56 = sbr.rel (0) target = $region41
    $region40: #{critic_forward.1} parent=1 // pred_region
      %57 = dma.done [#allocation4], 4096
    $region41: #{critic_forward.1} parent=1 // pred_fallthru
      _
    // Predicated region
    $region42: #{critic_forward.1} parent=1 // pred_check
      _
    $region43: #{critic_forward.1} parent=1 // pred_check_branch
      %59 = sbr.rel (0) target = $region45
    $region44: #{critic_forward.1} parent=1 // pred_region
      %60 = dma.done [#allocation6], 4096
    $region45: #{critic_forward.1} parent=1 // pred_fallthru
      _
    %v62 = vld [vmem:[%s0] sm:$0xf]
    %v63 = vld [vmem:[%s0 + $0x4] sm:$0xf]
    %v64 = vld [vmem:[%s0 + $0x8] sm:$0xf]
    %v65 = vld [vmem:[%s0 + $0xc] sm:$0xf]
    %v66 = vld [vmem:[%s0 + $0x10] sm:$0xf]
    %v67 = vld [vmem:[%s0 + $0x14] sm:$0xf]
    %v68 = vld [vmem:[%s0 + $0x18] sm:$0xf]
    %v69 = vld [vmem:[%s0 + $0x1c] sm:$0xf]
    %v70 = vld [vmem:[%s0 + $0x20] sm:$0xf]
    %v71 = vld [vmem:[%s0 + $0x24] sm:$0xf]
    %v72 = vld [vmem:[%s0 + $0x28] sm:$0xf]
    %v73 = vld [vmem:[%s0 + $0x2c] sm:$0xf]
    %v74 = vld [vmem:[%s0 + $0x30] sm:$0xf]
    %v75 = vld [vmem:[%s0 + $0x34] sm:$0xf]
    %v76 = vld [vmem:[%s0 + $0x38] sm:$0xf]
    %v77 = vld [vmem:[%s0 + $0x3c] sm:$0xf]
    %v78 = vld [vmem:[%s1] sm:$0xff]
    %v79 = vld [vmem:[%s1 + $0x8] sm:$0xff]
    %v80 = vld [vmem:[%s1 + $0x10] sm:$0xff]
    %v81 = vld [vmem:[%s1 + $0x18] sm:$0xff]
    %v82 = vld [vmem:[%s1 + $0x20] sm:$0xff]
    %v83 = vld [vmem:[%s1 + $0x28] sm:$0xff]
    %v84 = vld [vmem:[%s1 + $0x30] sm:$0xff]
    %v85 = vld [vmem:[%s1 + $0x38] sm:$0xff]
    %v86 = vld [vmem:[%s2] sm:$0x3]
    %v88 = vlaneseq
    %v89 = vshrl.u32 %v88, 7
    %v90 = vsub.s32 0, %v89
    %v91 = vrot.slane %v86, %v90
    %v92 = vlaneseq
    %v93 = vshrl.u32 %v92, 7
    %v94 = vsub.s32 1, %v93
    %v95 = vrot.slane %v86, %v94
    %v114 = vunpack.c.l.b16 %v62
    %v115 = vunpack.c.l.b16 %v63
    %v116 = vunpack.c.l.b16 %v64
    %v117 = vunpack.c.l.b16 %v65
    %v118 = vunpack.c.l.b16 %v66
    %v119 = vunpack.c.l.b16 %v67
    %v120 = vunpack.c.l.b16 %v68
    %v121 = vunpack.c.l.b16 %v69
    %v122 = vunpack.c.l.b16 %v70
    %v123 = vunpack.c.l.b16 %v71
    %v124 = vunpack.c.l.b16 %v72
    %v125 = vunpack.c.l.b16 %v73
    %v126 = vunpack.c.l.b16 %v74
    %v127 = vunpack.c.l.b16 %v75
    %v128 = vunpack.c.l.b16 %v76
    %v129 = vunpack.c.l.b16 %v77
    %v130 = vpack.c.b16 %v115, %v114
    %v131 = vpack.c.b16 %v117, %v116
    %v132 = vpack.c.b16 %v119, %v118
    %v133 = vpack.c.b16 %v121, %v120
    %v134 = vpack.c.b16 %v123, %v122
    %v135 = vpack.c.b16 %v125, %v124
    %v136 = vpack.c.b16 %v127, %v126
    %v137 = vpack.c.b16 %v129, %v128
    %v146 = vunpack.c.l.b16 %v78
    %v147 = vunpack.c.h.b16 %v78
    %v148 = vunpack.c.l.b16 %v79
    %v149 = vunpack.c.h.b16 %v79
    %v150 = vunpack.c.l.b16 %v80
    %v151 = vunpack.c.h.b16 %v80
    %v152 = vunpack.c.l.b16 %v81
    %v153 = vunpack.c.h.b16 %v81
    %v154 = vunpack.c.l.b16 %v82
    %v155 = vunpack.c.h.b16 %v82
    %v156 = vunpack.c.l.b16 %v83
    %v157 = vunpack.c.h.b16 %v83
    %v158 = vunpack.c.l.b16 %v84
    %v159 = vunpack.c.h.b16 %v84
    %v160 = vunpack.c.l.b16 %v85
    %v161 = vunpack.c.h.b16 %v85
    %v162 = vpack.c.b16 %v148, %v146
    %v163 = vpack.c.b16 %v149, %v147
    %v164 = vpack.c.b16 %v152, %v150
    %v165 = vpack.c.b16 %v153, %v151
    %v166 = vpack.c.b16 %v156, %v154
    %v167 = vpack.c.b16 %v157, %v155
    %v168 = vpack.c.b16 %v160, %v158
    %v169 = vpack.c.b16 %v161, %v159
    %vm178 = vcmask 523264
    %v180 = vsel %vm178, %v130, 0
    %v183 = vsel %vm178, %v131, 0
    %v186 = vsel %vm178, %v132, 0
    %v189 = vsel %vm178, %v133, 0
    %v192 = vsel %vm178, %v134, 0
    %v195 = vsel %vm178, %v135, 0
    %v198 = vsel %vm178, %v136, 0
    %v201 = vsel %vm178, %v137, 0
    %203 = vmatprep.subr.bf16.mxu0 %v163
    %204 = vmatpush1.bf16.msra.mxu0 %v162
    %205 = vmatprep.subr.bf16.mxu0 %v165
    %206 = vmatpush1.bf16.msra.mxu0 %v164
    %207 = vmatprep.subr.bf16.mxu0 %v167
    %208 = vmatpush1.bf16.msra.mxu0 %v166
    %209 = vmatprep.subr.bf16.mxu0 %v169
    %210 = vmatpush1.bf16.msra.mxu0 %v168
    %211 = vmatprep.subr.bf16.mxu0 0
    %212 = vmatpush1.bf16.msra.mxu0 0
    %213 = vmatprep.subr.bf16.mxu0 0
    %214 = vmatpush1.bf16.msra.mxu0 0
    %215 = vmatprep.subr.bf16.mxu0 0
    %216 = vmatpush1.bf16.msra.mxu0 0
    %217 = vmatprep.subr.bf16.mxu0 0
    %218 = vmatpush1.bf16.msra.mxu0 0
    %219 = vmatprep.subr.bf16.mxu0 0
    %220 = vmatpush1.bf16.msra.mxu0 0
    %221 = vmatprep.subr.bf16.mxu0 0
    %222 = vmatpush1.bf16.msra.mxu0 0
    %223 = vmatprep.subr.bf16.mxu0 0
    %224 = vmatpush1.bf16.msra.mxu0 0
    %225 = vmatprep.subr.bf16.mxu0 0
    %226 = vmatpush1.bf16.msra.mxu0 0
    %227 = vmatprep.subr.bf16.mxu0 0
    %228 = vmatpush1.bf16.msra.mxu0 0
    %229 = vmatprep.subr.bf16.mxu0 0
    %230 = vmatpush1.bf16.msra.mxu0 0
    %231 = vmatprep.subr.bf16.mxu0 0
    %232 = vmatpush1.bf16.msra.mxu0 0
    %233 = vmatprep.subr.bf16.mxu0 0
    %234 = vmatpush1.bf16.msra.mxu0 0
    %235 = vmatprep.mubr.bf16.mxu0 0
    %236 = vmatmul.mubr.bf16.gmra.mrb[0].mxu0 %v180
    %v237 = vpop.f32.mrb[0].mxu0
    %v238 = vadd.f32 %v91, %v237
    %v239 = vpop.f32.mrb[0].mxu0
    %v240 = vadd.f32 %v95, %v239
    %v241 = vpop.f32.mrb[0].mxu0
    %v242 = vadd.f32 %v91, %v241
    %v243 = vpop.f32.mrb[0].mxu0
    %v244 = vadd.f32 %v95, %v243
    %245 = vmatprep.mubr.bf16.mxu0 0
    %246 = vmatmul.mubr.bf16.gmra.mrb[0].mxu0 %v183
    %v247 = vpop.f32.mrb[0].mxu0
    %v248 = vadd.f32 %v91, %v247
    %v249 = vpop.f32.mrb[0].mxu0
    %v250 = vadd.f32 %v95, %v249
    %v251 = vpop.f32.mrb[0].mxu0
    %v252 = vadd.f32 %v91, %v251
    %v253 = vpop.f32.mrb[0].mxu0
    %v254 = vadd.f32 %v95, %v253
    %255 = vmatprep.mubr.bf16.mxu0 0
    %256 = vmatmul.mubr.bf16.gmra.mrb[0].mxu0 %v186
    %v257 = vpop.f32.mrb[0].mxu0
    %v258 = vadd.f32 %v91, %v257
    %v259 = vpop.f32.mrb[0].mxu0
    %v260 = vadd.f32 %v95, %v259
    %v261 = vpop.f32.mrb[0].mxu0
    %v262 = vadd.f32 %v91, %v261
    %v263 = vpop.f32.mrb[0].mxu0
    %v264 = vadd.f32 %v95, %v263
    %265 = vmatprep.mubr.bf16.mxu0 0
    %266 = vmatmul.mubr.bf16.gmra.mrb[0].mxu0 %v189
    %v267 = vpop.f32.mrb[0].mxu0
    %v268 = vadd.f32 %v91, %v267
    %v269 = vpop.f32.mrb[0].mxu0
    %v270 = vadd.f32 %v95, %v269
    %v271 = vpop.f32.mrb[0].mxu0
    %v272 = vadd.f32 %v91, %v271
    %v273 = vpop.f32.mrb[0].mxu0
    %v274 = vadd.f32 %v95, %v273
    %275 = vmatprep.mubr.bf16.mxu0 0
    %276 = vmatmul.mubr.bf16.gmra.mrb[0].mxu0 %v192
    %v277 = vpop.f32.mrb[0].mxu0
    %v278 = vadd.f32 %v91, %v277
    %v279 = vpop.f32.mrb[0].mxu0
    %v280 = vadd.f32 %v95, %v279
    %v281 = vpop.f32.mrb[0].mxu0
    %v282 = vadd.f32 %v91, %v281
    %v283 = vpop.f32.mrb[0].mxu0
    %v284 = vadd.f32 %v95, %v283
    %285 = vmatprep.mubr.bf16.mxu0 0
    %286 = vmatmul.mubr.bf16.gmra.mrb[0].mxu0 %v195
    %v287 = vpop.f32.mrb[0].mxu0
    %v288 = vadd.f32 %v91, %v287
    %v289 = vpop.f32.mrb[0].mxu0
    %v290 = vadd.f32 %v95, %v289
    %v291 = vpop.f32.mrb[0].mxu0
    %v292 = vadd.f32 %v91, %v291
    %v293 = vpop.f32.mrb[0].mxu0
    %v294 = vadd.f32 %v95, %v293
    %295 = vmatprep.mubr.bf16.mxu0 0
    %296 = vmatmul.mubr.bf16.gmra.mrb[0].mxu0 %v198
    %v297 = vpop.f32.mrb[0].mxu0
    %v298 = vadd.f32 %v91, %v297
    %v299 = vpop.f32.mrb[0].mxu0
    %v300 = vadd.f32 %v95, %v299
    %v301 = vpop.f32.mrb[0].mxu0
    %v302 = vadd.f32 %v91, %v301
    %v303 = vpop.f32.mrb[0].mxu0
    %v304 = vadd.f32 %v95, %v303
    %305 = vmatprep.mubr.bf16.mxu0 0
    %306 = vmatmul.mubr.bf16.gmra.mrb[0].mxu0 %v201
    %v307 = vpop.f32.mrb[0].mxu0
    %v308 = vadd.f32 %v91, %v307
    %v309 = vpop.f32.mrb[0].mxu0
    %v310 = vadd.f32 %v95, %v309
    %v311 = vpop.f32.mrb[0].mxu0
    %v312 = vadd.f32 %v91, %v311
    %v313 = vpop.f32.mrb[0].mxu0
    %v314 = vadd.f32 %v95, %v313
    %315 = vdwg.mxu0
    %v316 = vmax.f32 %v238, 0.0
    %v317 = vmax.f32 %v240, 0.0
    %v318 = vmax.f32 %v242, 0.0
    %v319 = vmax.f32 %v244, 0.0
    %v320 = vmax.f32 %v248, 0.0
    %v321 = vmax.f32 %v250, 0.0
    %v322 = vmax.f32 %v252, 0.0
    %v323 = vmax.f32 %v254, 0.0
    %v324 = vmax.f32 %v258, 0.0
    %v325 = vmax.f32 %v260, 0.0
    %v326 = vmax.f32 %v262, 0.0
    %v327 = vmax.f32 %v264, 0.0
    %v328 = vmax.f32 %v268, 0.0
    %v329 = vmax.f32 %v270, 0.0
    %v330 = vmax.f32 %v272, 0.0
    %v331 = vmax.f32 %v274, 0.0
    %v332 = vmax.f32 %v278, 0.0
    %v333 = vmax.f32 %v280, 0.0
    %v334 = vmax.f32 %v282, 0.0
    %v335 = vmax.f32 %v284, 0.0
    %v336 = vmax.f32 %v288, 0.0
    %v337 = vmax.f32 %v290, 0.0
    %v338 = vmax.f32 %v292, 0.0
    %v339 = vmax.f32 %v294, 0.0
    %v340 = vmax.f32 %v298, 0.0
    %v341 = vmax.f32 %v300, 0.0
    %v342 = vmax.f32 %v302, 0.0
    %v343 = vmax.f32 %v304, 0.0
    %v344 = vmax.f32 %v308, 0.0
    %v345 = vmax.f32 %v310, 0.0
    %v346 = vmax.f32 %v312, 0.0
    %v347 = vmax.f32 %v314, 0.0
    %v348 = vpack.c.bf16 %v318, %v316
    %v349 = vpack.c.bf16 %v319, %v317
    %v350 = vpack.c.bf16 %v322, %v320
    %v351 = vpack.c.bf16 %v323, %v321
    %v352 = vpack.c.bf16 %v326, %v324
    %v353 = vpack.c.bf16 %v327, %v325
    %v354 = vpack.c.bf16 %v330, %v328
    %v355 = vpack.c.bf16 %v331, %v329
    %v356 = vpack.c.bf16 %v334, %v332
    %v357 = vpack.c.bf16 %v335, %v333
    %v358 = vpack.c.bf16 %v338, %v336
    %v359 = vpack.c.bf16 %v339, %v337
    %v360 = vpack.c.bf16 %v342, %v340
    %v361 = vpack.c.bf16 %v343, %v341
    %v362 = vpack.c.bf16 %v346, %v344
    %v363 = vpack.c.bf16 %v347, %v345
    %v364 = vld [vmem:[#allocation3] sm:$0xff]
    %v365 = vld [vmem:[#allocation3 + $0x8] sm:$0xff]
    %v366 = vld [vmem:[#allocation3 + $0x10] sm:$0xff]
    %v367 = vld [vmem:[#allocation3 + $0x18] sm:$0xff]
    %v368 = vld [vmem:[#allocation3 + $0x20] sm:$0xff]
    %v369 = vld [vmem:[#allocation3 + $0x28] sm:$0xff]
    %v370 = vld [vmem:[#allocation3 + $0x30] sm:$0xff]
    %v371 = vld [vmem:[#allocation3 + $0x38] sm:$0xff]
    %v372 = vld [vmem:[#allocation3 + $0x40] sm:$0xff]
    %v373 = vld [vmem:[#allocation3 + $0x48] sm:$0xff]
    %v374 = vld [vmem:[#allocation3 + $0x50] sm:$0xff]
    %v375 = vld [vmem:[#allocation3 + $0x58] sm:$0xff]
    %v376 = vld [vmem:[#allocation3 + $0x60] sm:$0xff]
    %v377 = vld [vmem:[#allocation3 + $0x68] sm:$0xff]
    %v378 = vld [vmem:[#allocation3 + $0x70] sm:$0xff]
    %v379 = vld [vmem:[#allocation3 + $0x78] sm:$0xff]
    %v380 = vld [vmem:[#allocation3 + $0x80] sm:$0xff]
    %v381 = vld [vmem:[#allocation3 + $0x88] sm:$0xff]
    %v382 = vld [vmem:[#allocation3 + $0x90] sm:$0xff]
    %v383 = vld [vmem:[#allocation3 + $0x98] sm:$0xff]
    %v384 = vld [vmem:[#allocation3 + $0xa0] sm:$0xff]
    %v385 = vld [vmem:[#allocation3 + $0xa8] sm:$0xff]
    %v386 = vld [vmem:[#allocation3 + $0xb0] sm:$0xff]
    %v387 = vld [vmem:[#allocation3 + $0xb8] sm:$0xff]
    %v388 = vld [vmem:[#allocation3 + $0xc0] sm:$0xff]
    %v389 = vld [vmem:[#allocation3 + $0xc8] sm:$0xff]
    %v390 = vld [vmem:[#allocation3 + $0xd0] sm:$0xff]
    %v391 = vld [vmem:[#allocation3 + $0xd8] sm:$0xff]
    %v392 = vld [vmem:[#allocation3 + $0xe0] sm:$0xff]
    %v393 = vld [vmem:[#allocation3 + $0xe8] sm:$0xff]
    %v394 = vld [vmem:[#allocation3 + $0xf0] sm:$0xff]
    %v395 = vld [vmem:[#allocation3 + $0xf8] sm:$0xff]
    %v396 = vld [vmem:[%s4] sm:$0x3]
    %v398 = vlaneseq
    %v399 = vshrl.u32 %v398, 7
    %v400 = vsub.s32 0, %v399
    %v401 = vrot.slane %v396, %v400
    %v402 = vlaneseq
    %v403 = vshrl.u32 %v402, 7
    %v404 = vsub.s32 1, %v403
    %v405 = vrot.slane %v396, %v404
    %v440 = vunpack.c.l.b16 %v364
    %v441 = vunpack.c.h.b16 %v364
    %v442 = vunpack.c.l.b16 %v365
    %v443 = vunpack.c.h.b16 %v365
    %v444 = vunpack.c.l.b16 %v366
    %v445 = vunpack.c.h.b16 %v366
    %v446 = vunpack.c.l.b16 %v367
    %v447 = vunpack.c.h.b16 %v367
    %v448 = vunpack.c.l.b16 %v368
    %v449 = vunpack.c.h.b16 %v368
    %v450 = vunpack.c.l.b16 %v369
    %v451 = vunpack.c.h.b16 %v369
    %v452 = vunpack.c.l.b16 %v370
    %v453 = vunpack.c.h.b16 %v370
    %v454 = vunpack.c.l.b16 %v371
    %v455 = vunpack.c.h.b16 %v371
    %v456 = vunpack.c.l.b16 %v372
    %v457 = vunpack.c.h.b16 %v372
    %v458 = vunpack.c.l.b16 %v373
    %v459 = vunpack.c.h.b16 %v373
    %v460 = vunpack.c.l.b16 %v374
    %v461 = vunpack.c.h.b16 %v374
    %v462 = vunpack.c.l.b16 %v375
    %v463 = vunpack.c.h.b16 %v375
    %v464 = vunpack.c.l.b16 %v376
    %v465 = vunpack.c.h.b16 %v376
    %v466 = vunpack.c.l.b16 %v377
    %v467 = vunpack.c.h.b16 %v377
    %v468 = vunpack.c.l.b16 %v378
    %v469 = vunpack.c.h.b16 %v378
    %v470 = vunpack.c.l.b16 %v379
    %v471 = vunpack.c.h.b16 %v379
    %v472 = vunpack.c.l.b16 %v380
    %v473 = vunpack.c.h.b16 %v380
    %v474 = vunpack.c.l.b16 %v381
    %v475 = vunpack.c.h.b16 %v381
    %v476 = vunpack.c.l.b16 %v382
    %v477 = vunpack.c.h.b16 %v382
    %v478 = vunpack.c.l.b16 %v383
    %v479 = vunpack.c.h.b16 %v383
    %v480 = vunpack.c.l.b16 %v384
    %v481 = vunpack.c.h.b16 %v384
    %v482 = vunpack.c.l.b16 %v385
    %v483 = vunpack.c.h.b16 %v385
    %v484 = vunpack.c.l.b16 %v386
    %v485 = vunpack.c.h.b16 %v386
    %v486 = vunpack.c.l.b16 %v387
    %v487 = vunpack.c.h.b16 %v387
    %v488 = vunpack.c.l.b16 %v388
    %v489 = vunpack.c.h.b16 %v388
    %v490 = vunpack.c.l.b16 %v389
    %v491 = vunpack.c.h.b16 %v389
    %v492 = vunpack.c.l.b16 %v390
    %v493 = vunpack.c.h.b16 %v390
    %v494 = vunpack.c.l.b16 %v391
    %v495 = vunpack.c.h.b16 %v391
    %v496 = vunpack.c.l.b16 %v392
    %v497 = vunpack.c.h.b16 %v392
    %v498 = vunpack.c.l.b16 %v393
    %v499 = vunpack.c.h.b16 %v393
    %v500 = vunpack.c.l.b16 %v394
    %v501 = vunpack.c.h.b16 %v394
    %v502 = vunpack.c.l.b16 %v395
    %v503 = vunpack.c.h.b16 %v395
    %v504 = vpack.c.b16 %v442, %v440
    %v505 = vpack.c.b16 %v443, %v441
    %v506 = vpack.c.b16 %v446, %v444
    %v507 = vpack.c.b16 %v447, %v445
    %v508 = vpack.c.b16 %v450, %v448
    %v509 = vpack.c.b16 %v451, %v449
    %v510 = vpack.c.b16 %v454, %v452
    %v511 = vpack.c.b16 %v455, %v453
    %v512 = vpack.c.b16 %v458, %v456
    %v513 = vpack.c.b16 %v459, %v457
    %v514 = vpack.c.b16 %v462, %v460
    %v515 = vpack.c.b16 %v463, %v461
    %v516 = vpack.c.b16 %v466, %v464
    %v517 = vpack.c.b16 %v467, %v465
    %v518 = vpack.c.b16 %v470, %v468
    %v519 = vpack.c.b16 %v471, %v469
    %v520 = vpack.c.b16 %v474, %v472
    %v521 = vpack.c.b16 %v475, %v473
    %v522 = vpack.c.b16 %v478, %v476
    %v523 = vpack.c.b16 %v479, %v477
    %v524 = vpack.c.b16 %v482, %v480
    %v525 = vpack.c.b16 %v483, %v481
    %v526 = vpack.c.b16 %v486, %v484
    %v527 = vpack.c.b16 %v487, %v485
    %v528 = vpack.c.b16 %v490, %v488
    %v529 = vpack.c.b16 %v491, %v489
    %v530 = vpack.c.b16 %v494, %v492
    %v531 = vpack.c.b16 %v495, %v493
    %v532 = vpack.c.b16 %v498, %v496
    %v533 = vpack.c.b16 %v499, %v497
    %v534 = vpack.c.b16 %v502, %v500
    %v535 = vpack.c.b16 %v503, %v501
    %568 = vmatprep.subr.bf16.mxu0 %v505
    %569 = vmatpush1.bf16.msra.mxu0 %v504
    %570 = vmatprep.subr.bf16.mxu0 %v507
    %571 = vmatpush1.bf16.msra.mxu0 %v506
    %572 = vmatprep.subr.bf16.mxu0 %v509
    %573 = vmatpush1.bf16.msra.mxu0 %v508
    %574 = vmatprep.subr.bf16.mxu0 %v511
    %575 = vmatpush1.bf16.msra.mxu0 %v510
    %576 = vmatprep.subr.bf16.mxu0 %v513
    %577 = vmatpush1.bf16.msra.mxu0 %v512
    %578 = vmatprep.subr.bf16.mxu0 %v515
    %579 = vmatpush1.bf16.msra.mxu0 %v514
    %580 = vmatprep.subr.bf16.mxu0 %v517
    %581 = vmatpush1.bf16.msra.mxu0 %v516
    %582 = vmatprep.subr.bf16.mxu0 %v519
    %583 = vmatpush1.bf16.msra.mxu0 %v518
    %584 = vmatprep.subr.bf16.mxu0 %v521
    %585 = vmatpush1.bf16.msra.mxu0 %v520
    %586 = vmatprep.subr.bf16.mxu0 %v523
    %587 = vmatpush1.bf16.msra.mxu0 %v522
    %588 = vmatprep.subr.bf16.mxu0 %v525
    %589 = vmatpush1.bf16.msra.mxu0 %v524
    %590 = vmatprep.subr.bf16.mxu0 %v527
    %591 = vmatpush1.bf16.msra.mxu0 %v526
    %592 = vmatprep.subr.bf16.mxu0 %v529
    %593 = vmatpush1.bf16.msra.mxu0 %v528
    %594 = vmatprep.subr.bf16.mxu0 %v531
    %595 = vmatpush1.bf16.msra.mxu0 %v530
    %596 = vmatprep.subr.bf16.mxu0 %v533
    %597 = vmatpush1.bf16.msra.mxu0 %v532
    %598 = vmatprep.subr.bf16.mxu0 %v535
    %599 = vmatpush1.bf16.msra.mxu0 %v534
    %600 = vmatprep.mubr.bf16.mxu0 %v349
    %601 = vmatmul.mubr.bf16.gmra.mrb[0].mxu0 %v348
    %v602 = vpop.f32.mrb[0].mxu0
    %v603 = vadd.f32 %v401, %v602
    %v604 = vpop.f32.mrb[0].mxu0
    %v605 = vadd.f32 %v405, %v604
    %v606 = vpop.f32.mrb[0].mxu0
    %v607 = vadd.f32 %v401, %v606
    %v608 = vpop.f32.mrb[0].mxu0
    %v609 = vadd.f32 %v405, %v608
    %610 = vmatprep.mubr.bf16.mxu0 %v351
    %611 = vmatmul.mubr.bf16.gmra.mrb[0].mxu0 %v350
    %v612 = vpop.f32.mrb[0].mxu0
    %v613 = vadd.f32 %v401, %v612
    %v614 = vpop.f32.mrb[0].mxu0
    %v615 = vadd.f32 %v405, %v614
    %v616 = vpop.f32.mrb[0].mxu0
    %v617 = vadd.f32 %v401, %v616
    %v618 = vpop.f32.mrb[0].mxu0
    %v619 = vadd.f32 %v405, %v618
    %620 = vmatprep.mubr.bf16.mxu0 %v353
    %621 = vmatmul.mubr.bf16.gmra.mrb[0].mxu0 %v352
    %v622 = vpop.f32.mrb[0].mxu0
    %v623 = vadd.f32 %v401, %v622
    %v624 = vpop.f32.mrb[0].mxu0
    %v625 = vadd.f32 %v405, %v624
    %v626 = vpop.f32.mrb[0].mxu0
    %v627 = vadd.f32 %v401, %v626
    %v628 = vpop.f32.mrb[0].mxu0
    %v629 = vadd.f32 %v405, %v628
    %630 = vmatprep.mubr.bf16.mxu0 %v355
    %631 = vmatmul.mubr.bf16.gmra.mrb[0].mxu0 %v354
    %v632 = vpop.f32.mrb[0].mxu0
    %v633 = vadd.f32 %v401, %v632
    %v634 = vpop.f32.mrb[0].mxu0
    %v635 = vadd.f32 %v405, %v634
    %v636 = vpop.f32.mrb[0].mxu0
    %v637 = vadd.f32 %v401, %v636
    %v638 = vpop.f32.mrb[0].mxu0
    %v639 = vadd.f32 %v405, %v638
    %640 = vmatprep.mubr.bf16.mxu0 %v357
    %641 = vmatmul.mubr.bf16.gmra.mrb[0].mxu0 %v356
    %v642 = vpop.f32.mrb[0].mxu0
    %v643 = vadd.f32 %v401, %v642
    %v644 = vpop.f32.mrb[0].mxu0
    %v645 = vadd.f32 %v405, %v644
    %v646 = vpop.f32.mrb[0].mxu0
    %v647 = vadd.f32 %v401, %v646
    %v648 = vpop.f32.mrb[0].mxu0
    %v649 = vadd.f32 %v405, %v648
    %650 = vmatprep.mubr.bf16.mxu0 %v359
    %651 = vmatmul.mubr.bf16.gmra.mrb[0].mxu0 %v358
    %v652 = vpop.f32.mrb[0].mxu0
    %v653 = vadd.f32 %v401, %v652
    %v654 = vpop.f32.mrb[0].mxu0
    %v655 = vadd.f32 %v405, %v654
    %v656 = vpop.f32.mrb[0].mxu0
    %v657 = vadd.f32 %v401, %v656
    %v658 = vpop.f32.mrb[0].mxu0
    %v659 = vadd.f32 %v405, %v658
    %660 = vmatprep.mubr.bf16.mxu0 %v361
    %661 = vmatmul.mubr.bf16.gmra.mrb[0].mxu0 %v360
    %v662 = vpop.f32.mrb[0].mxu0
    %v663 = vadd.f32 %v401, %v662
    %v664 = vpop.f32.mrb[0].mxu0
    %v665 = vadd.f32 %v405, %v664
    %v666 = vpop.f32.mrb[0].mxu0
    %v667 = vadd.f32 %v401, %v666
    %v668 = vpop.f32.mrb[0].mxu0
    %v669 = vadd.f32 %v405, %v668
    %670 = vmatprep.mubr.bf16.mxu0 %v363
    %671 = vmatmul.mubr.bf16.gmra.mrb[0].mxu0 %v362
    %v672 = vpop.f32.mrb[0].mxu0
    %v673 = vadd.f32 %v401, %v672
    %v674 = vpop.f32.mrb[0].mxu0
    %v675 = vadd.f32 %v405, %v674
    %v676 = vpop.f32.mrb[0].mxu0
    %v677 = vadd.f32 %v401, %v676
    %v678 = vpop.f32.mrb[0].mxu0
    %v679 = vadd.f32 %v405, %v678
    %680 = vdwg.mxu0
    %v681 = vmax.f32 %v603, 0.0
    %v682 = vmax.f32 %v605, 0.0
    %v683 = vmax.f32 %v607, 0.0
    %v684 = vmax.f32 %v609, 0.0
    %v685 = vmax.f32 %v613, 0.0
    %v686 = vmax.f32 %v615, 0.0
    %v687 = vmax.f32 %v617, 0.0
    %v688 = vmax.f32 %v619, 0.0
    %v689 = vmax.f32 %v623, 0.0
    %v690 = vmax.f32 %v625, 0.0
    %v691 = vmax.f32 %v627, 0.0
    %v692 = vmax.f32 %v629, 0.0
    %v693 = vmax.f32 %v633, 0.0
    %v694 = vmax.f32 %v635, 0.0
    %v695 = vmax.f32 %v637, 0.0
    %v696 = vmax.f32 %v639, 0.0
    %v697 = vmax.f32 %v643, 0.0
    %v698 = vmax.f32 %v645, 0.0
    %v699 = vmax.f32 %v647, 0.0
    %v700 = vmax.f32 %v649, 0.0
    %v701 = vmax.f32 %v653, 0.0
    %v702 = vmax.f32 %v655, 0.0
    %v703 = vmax.f32 %v657, 0.0
    %v704 = vmax.f32 %v659, 0.0
    %v705 = vmax.f32 %v663, 0.0
    %v706 = vmax.f32 %v665, 0.0
    %v707 = vmax.f32 %v667, 0.0
    %v708 = vmax.f32 %v669, 0.0
    %v709 = vmax.f32 %v673, 0.0
    %v710 = vmax.f32 %v675, 0.0
    %v711 = vmax.f32 %v677, 0.0
    %v712 = vmax.f32 %v679, 0.0
    %v713 = vpack.c.bf16 %v683, %v681
    %v714 = vpack.c.bf16 %v684, %v682
    %v715 = vpack.c.bf16 %v687, %v685
    %v716 = vpack.c.bf16 %v688, %v686
    %v717 = vpack.c.bf16 %v691, %v689
    %v718 = vpack.c.bf16 %v692, %v690
    %v719 = vpack.c.bf16 %v695, %v693
    %v720 = vpack.c.bf16 %v696, %v694
    %v721 = vpack.c.bf16 %v699, %v697
    %v722 = vpack.c.bf16 %v700, %v698
    %v723 = vpack.c.bf16 %v703, %v701
    %v724 = vpack.c.bf16 %v704, %v702
    %v725 = vpack.c.bf16 %v707, %v705
    %v726 = vpack.c.bf16 %v708, %v706
    %v727 = vpack.c.bf16 %v711, %v709
    %v728 = vpack.c.bf16 %v712, %v710
    %v729 = vld [vmem:[#allocation5] sm:$0xff]
    %v730 = vld [vmem:[#allocation5 + $0x8] sm:$0xff]
    %v731 = vld [vmem:[#allocation5 + $0x10] sm:$0xff]
    %v732 = vld [vmem:[#allocation5 + $0x18] sm:$0xff]
    %v733 = vld [vmem:[#allocation5 + $0x20] sm:$0xff]
    %v734 = vld [vmem:[#allocation5 + $0x28] sm:$0xff]
    %v735 = vld [vmem:[#allocation5 + $0x30] sm:$0xff]
    %v736 = vld [vmem:[#allocation5 + $0x38] sm:$0xff]
    %v737 = vld [vmem:[#allocation5 + $0x40] sm:$0xff]
    %v738 = vld [vmem:[#allocation5 + $0x48] sm:$0xff]
    %v739 = vld [vmem:[#allocation5 + $0x50] sm:$0xff]
    %v740 = vld [vmem:[#allocation5 + $0x58] sm:$0xff]
    %v741 = vld [vmem:[#allocation5 + $0x60] sm:$0xff]
    %v742 = vld [vmem:[#allocation5 + $0x68] sm:$0xff]
    %v743 = vld [vmem:[#allocation5 + $0x70] sm:$0xff]
    %v744 = vld [vmem:[#allocation5 + $0x78] sm:$0xff]
    %v745 = vld [vmem:[#allocation5 + $0x80] sm:$0xff]
    %v746 = vld [vmem:[#allocation5 + $0x88] sm:$0xff]
    %v747 = vld [vmem:[#allocation5 + $0x90] sm:$0xff]
    %v748 = vld [vmem:[#allocation5 + $0x98] sm:$0xff]
    %v749 = vld [vmem:[#allocation5 + $0xa0] sm:$0xff]
    %v750 = vld [vmem:[#allocation5 + $0xa8] sm:$0xff]
    %v751 = vld [vmem:[#allocation5 + $0xb0] sm:$0xff]
    %v752 = vld [vmem:[#allocation5 + $0xb8] sm:$0xff]
    %v753 = vld [vmem:[#allocation5 + $0xc0] sm:$0xff]
    %v754 = vld [vmem:[#allocation5 + $0xc8] sm:$0xff]
    %v755 = vld [vmem:[#allocation5 + $0xd0] sm:$0xff]
    %v756 = vld [vmem:[#allocation5 + $0xd8] sm:$0xff]
    %v757 = vld [vmem:[#allocation5 + $0xe0] sm:$0xff]
    %v758 = vld [vmem:[#allocation5 + $0xe8] sm:$0xff]
    %v759 = vld [vmem:[#allocation5 + $0xf0] sm:$0xff]
    %v760 = vld [vmem:[#allocation5 + $0xf8] sm:$0xff]
    %v761 = vld [vmem:[%s6] sm:$0x3]
    %v763 = vlaneseq
    %v764 = vshrl.u32 %v763, 7
    %v765 = vsub.s32 0, %v764
    %v766 = vrot.slane %v761, %v765
    %v767 = vlaneseq
    %v768 = vshrl.u32 %v767, 7
    %v769 = vsub.s32 1, %v768
    %v770 = vrot.slane %v761, %v769
    %v805 = vunpack.c.l.b16 %v729
    %v806 = vunpack.c.h.b16 %v729
    %v807 = vunpack.c.l.b16 %v730
    %v808 = vunpack.c.h.b16 %v730
    %v809 = vunpack.c.l.b16 %v731
    %v810 = vunpack.c.h.b16 %v731
    %v811 = vunpack.c.l.b16 %v732
    %v812 = vunpack.c.h.b16 %v732
    %v813 = vunpack.c.l.b16 %v733
    %v814 = vunpack.c.h.b16 %v733
    %v815 = vunpack.c.l.b16 %v734
    %v816 = vunpack.c.h.b16 %v734
    %v817 = vunpack.c.l.b16 %v735
    %v818 = vunpack.c.h.b16 %v735
    %v819 = vunpack.c.l.b16 %v736
    %v820 = vunpack.c.h.b16 %v736
    %v821 = vunpack.c.l.b16 %v737
    %v822 = vunpack.c.h.b16 %v737
    %v823 = vunpack.c.l.b16 %v738
    %v824 = vunpack.c.h.b16 %v738
    %v825 = vunpack.c.l.b16 %v739
    %v826 = vunpack.c.h.b16 %v739
    %v827 = vunpack.c.l.b16 %v740
    %v828 = vunpack.c.h.b16 %v740
    %v829 = vunpack.c.l.b16 %v741
    %v830 = vunpack.c.h.b16 %v741
    %v831 = vunpack.c.l.b16 %v742
    %v832 = vunpack.c.h.b16 %v742
    %v833 = vunpack.c.l.b16 %v743
    %v834 = vunpack.c.h.b16 %v743
    %v835 = vunpack.c.l.b16 %v744
    %v836 = vunpack.c.h.b16 %v744
    %v837 = vunpack.c.l.b16 %v745
    %v838 = vunpack.c.h.b16 %v745
    %v839 = vunpack.c.l.b16 %v746
    %v840 = vunpack.c.h.b16 %v746
    %v841 = vunpack.c.l.b16 %v747
    %v842 = vunpack.c.h.b16 %v747
    %v843 = vunpack.c.l.b16 %v748
    %v844 = vunpack.c.h.b16 %v748
    %v845 = vunpack.c.l.b16 %v749
    %v846 = vunpack.c.h.b16 %v749
    %v847 = vunpack.c.l.b16 %v750
    %v848 = vunpack.c.h.b16 %v750
    %v849 = vunpack.c.l.b16 %v751
    %v850 = vunpack.c.h.b16 %v751
    %v851 = vunpack.c.l.b16 %v752
    %v852 = vunpack.c.h.b16 %v752
    %v853 = vunpack.c.l.b16 %v753
    %v854 = vunpack.c.h.b16 %v753
    %v855 = vunpack.c.l.b16 %v754
    %v856 = vunpack.c.h.b16 %v754
    %v857 = vunpack.c.l.b16 %v755
    %v858 = vunpack.c.h.b16 %v755
    %v859 = vunpack.c.l.b16 %v756
    %v860 = vunpack.c.h.b16 %v756
    %v861 = vunpack.c.l.b16 %v757
    %v862 = vunpack.c.h.b16 %v757
    %v863 = vunpack.c.l.b16 %v758
    %v864 = vunpack.c.h.b16 %v758
    %v865 = vunpack.c.l.b16 %v759
    %v866 = vunpack.c.h.b16 %v759
    %v867 = vunpack.c.l.b16 %v760
    %v868 = vunpack.c.h.b16 %v760
    %v869 = vpack.c.b16 %v807, %v805
    %v870 = vpack.c.b16 %v808, %v806
    %v871 = vpack.c.b16 %v811, %v809
    %v872 = vpack.c.b16 %v812, %v810
    %v873 = vpack.c.b16 %v815, %v813
    %v874 = vpack.c.b16 %v816, %v814
    %v875 = vpack.c.b16 %v819, %v817
    %v876 = vpack.c.b16 %v820, %v818
    %v877 = vpack.c.b16 %v823, %v821
    %v878 = vpack.c.b16 %v824, %v822
    %v879 = vpack.c.b16 %v827, %v825
    %v880 = vpack.c.b16 %v828, %v826
    %v881 = vpack.c.b16 %v831, %v829
    %v882 = vpack.c.b16 %v832, %v830
    %v883 = vpack.c.b16 %v835, %v833
    %v884 = vpack.c.b16 %v836, %v834
    %v885 = vpack.c.b16 %v839, %v837
    %v886 = vpack.c.b16 %v840, %v838
    %v887 = vpack.c.b16 %v843, %v841
    %v888 = vpack.c.b16 %v844, %v842
    %v889 = vpack.c.b16 %v847, %v845
    %v890 = vpack.c.b16 %v848, %v846
    %v891 = vpack.c.b16 %v851, %v849
    %v892 = vpack.c.b16 %v852, %v850
    %v893 = vpack.c.b16 %v855, %v853
    %v894 = vpack.c.b16 %v856, %v854
    %v895 = vpack.c.b16 %v859, %v857
    %v896 = vpack.c.b16 %v860, %v858
    %v897 = vpack.c.b16 %v863, %v861
    %v898 = vpack.c.b16 %v864, %v862
    %v899 = vpack.c.b16 %v867, %v865
    %v900 = vpack.c.b16 %v868, %v866
    %933 = vmatprep.subr.bf16.mxu0 %v870
    %934 = vmatpush1.bf16.msra.mxu0 %v869
    %935 = vmatprep.subr.bf16.mxu0 %v872
    %936 = vmatpush1.bf16.msra.mxu0 %v871
    %937 = vmatprep.subr.bf16.mxu0 %v874
    %938 = vmatpush1.bf16.msra.mxu0 %v873
    %939 = vmatprep.subr.bf16.mxu0 %v876
    %940 = vmatpush1.bf16.msra.mxu0 %v875
    %941 = vmatprep.subr.bf16.mxu0 %v878
    %942 = vmatpush1.bf16.msra.mxu0 %v877
    %943 = vmatprep.subr.bf16.mxu0 %v880
    %944 = vmatpush1.bf16.msra.mxu0 %v879
    %945 = vmatprep.subr.bf16.mxu0 %v882
    %946 = vmatpush1.bf16.msra.mxu0 %v881
    %947 = vmatprep.subr.bf16.mxu0 %v884
    %948 = vmatpush1.bf16.msra.mxu0 %v883
    %949 = vmatprep.subr.bf16.mxu0 %v886
    %950 = vmatpush1.bf16.msra.mxu0 %v885
    %951 = vmatprep.subr.bf16.mxu0 %v888
    %952 = vmatpush1.bf16.msra.mxu0 %v887
    %953 = vmatprep.subr.bf16.mxu0 %v890
    %954 = vmatpush1.bf16.msra.mxu0 %v889
    %955 = vmatprep.subr.bf16.mxu0 %v892
    %956 = vmatpush1.bf16.msra.mxu0 %v891
    %957 = vmatprep.subr.bf16.mxu0 %v894
    %958 = vmatpush1.bf16.msra.mxu0 %v893
    %959 = vmatprep.subr.bf16.mxu0 %v896
    %960 = vmatpush1.bf16.msra.mxu0 %v895
    %961 = vmatprep.subr.bf16.mxu0 %v898
    %962 = vmatpush1.bf16.msra.mxu0 %v897
    %963 = vmatprep.subr.bf16.mxu0 %v900
    %964 = vmatpush1.bf16.msra.mxu0 %v899
    %965 = vmatprep.mubr.bf16.mxu0 %v714
    %966 = vmatmul.mubr.bf16.gmra.mrb[0].mxu0 %v713
    %v967 = vpop.f32.mrb[0].mxu0
    %v968 = vadd.f32 %v766, %v967
    %v969 = vpop.f32.mrb[0].mxu0
    %v970 = vadd.f32 %v770, %v969
    %v971 = vpop.f32.mrb[0].mxu0
    %v972 = vadd.f32 %v766, %v971
    %v973 = vpop.f32.mrb[0].mxu0
    %v974 = vadd.f32 %v770, %v973
    %975 = vmatprep.mubr.bf16.mxu0 %v716
    %976 = vmatmul.mubr.bf16.gmra.mrb[0].mxu0 %v715
    %v977 = vpop.f32.mrb[0].mxu0
    %v978 = vadd.f32 %v766, %v977
    %v979 = vpop.f32.mrb[0].mxu0
    %v980 = vadd.f32 %v770, %v979
    %v981 = vpop.f32.mrb[0].mxu0
    %v982 = vadd.f32 %v766, %v981
    %v983 = vpop.f32.mrb[0].mxu0
    %v984 = vadd.f32 %v770, %v983
    %985 = vmatprep.mubr.bf16.mxu0 %v718
    %986 = vmatmul.mubr.bf16.gmra.mrb[0].mxu0 %v717
    %v987 = vpop.f32.mrb[0].mxu0
    %v988 = vadd.f32 %v766, %v987
    %v989 = vpop.f32.mrb[0].mxu0
    %v990 = vadd.f32 %v770, %v989
    %v991 = vpop.f32.mrb[0].mxu0
    %v992 = vadd.f32 %v766, %v991
    %v993 = vpop.f32.mrb[0].mxu0
    %v994 = vadd.f32 %v770, %v993
    %995 = vmatprep.mubr.bf16.mxu0 %v720
    %996 = vmatmul.mubr.bf16.gmra.mrb[0].mxu0 %v719
    %v997 = vpop.f32.mrb[0].mxu0
    %v998 = vadd.f32 %v766, %v997
    %v999 = vpop.f32.mrb[0].mxu0
    %v1000 = vadd.f32 %v770, %v999
    %v1001 = vpop.f32.mrb[0].mxu0
    %v1002 = vadd.f32 %v766, %v1001
    %v1003 = vpop.f32.mrb[0].mxu0
    %v1004 = vadd.f32 %v770, %v1003
    %1005 = vmatprep.mubr.bf16.mxu0 %v722
    %1006 = vmatmul.mubr.bf16.gmra.mrb[0].mxu0 %v721
    %v1007 = vpop.f32.mrb[0].mxu0
    %v1008 = vadd.f32 %v766, %v1007
    %v1009 = vpop.f32.mrb[0].mxu0
    %v1010 = vadd.f32 %v770, %v1009
    %v1011 = vpop.f32.mrb[0].mxu0
    %v1012 = vadd.f32 %v766, %v1011
    %v1013 = vpop.f32.mrb[0].mxu0
    %v1014 = vadd.f32 %v770, %v1013
    %1015 = vmatprep.mubr.bf16.mxu0 %v724
    %1016 = vmatmul.mubr.bf16.gmra.mrb[0].mxu0 %v723
    %v1017 = vpop.f32.mrb[0].mxu0
    %v1018 = vadd.f32 %v766, %v1017
    %v1019 = vpop.f32.mrb[0].mxu0
    %v1020 = vadd.f32 %v770, %v1019
    %v1021 = vpop.f32.mrb[0].mxu0
    %v1022 = vadd.f32 %v766, %v1021
    %v1023 = vpop.f32.mrb[0].mxu0
    %v1024 = vadd.f32 %v770, %v1023
    %1025 = vmatprep.mubr.bf16.mxu0 %v726
    %1026 = vmatmul.mubr.bf16.gmra.mrb[0].mxu0 %v725
    %v1027 = vpop.f32.mrb[0].mxu0
    %v1028 = vadd.f32 %v766, %v1027
    %v1029 = vpop.f32.mrb[0].mxu0
    %v1030 = vadd.f32 %v770, %v1029
    %v1031 = vpop.f32.mrb[0].mxu0
    %v1032 = vadd.f32 %v766, %v1031
    %v1033 = vpop.f32.mrb[0].mxu0
    %v1034 = vadd.f32 %v770, %v1033
    %1035 = vmatprep.mubr.bf16.mxu0 %v728
    %1036 = vmatmul.mubr.bf16.gmra.mrb[0].mxu0 %v727
    %v1037 = vpop.f32.mrb[0].mxu0
    %v1038 = vadd.f32 %v766, %v1037
    %v1039 = vpop.f32.mrb[0].mxu0
    %v1040 = vadd.f32 %v770, %v1039
    %v1041 = vpop.f32.mrb[0].mxu0
    %v1042 = vadd.f32 %v766, %v1041
    %v1043 = vpop.f32.mrb[0].mxu0
    %v1044 = vadd.f32 %v770, %v1043
    %1045 = vdwg.mxu0
    %v1046 = vmax.f32 %v968, 0.0
    %v1047 = vmax.f32 %v970, 0.0
    %v1048 = vmax.f32 %v972, 0.0
    %v1049 = vmax.f32 %v974, 0.0
    %v1050 = vmax.f32 %v978, 0.0
    %v1051 = vmax.f32 %v980, 0.0
    %v1052 = vmax.f32 %v982, 0.0
    %v1053 = vmax.f32 %v984, 0.0
    %v1054 = vmax.f32 %v988, 0.0
    %v1055 = vmax.f32 %v990, 0.0
    %v1056 = vmax.f32 %v992, 0.0
    %v1057 = vmax.f32 %v994, 0.0
    %v1058 = vmax.f32 %v998, 0.0
    %v1059 = vmax.f32 %v1000, 0.0
    %v1060 = vmax.f32 %v1002, 0.0
    %v1061 = vmax.f32 %v1004, 0.0
    %v1062 = vmax.f32 %v1008, 0.0
    %v1063 = vmax.f32 %v1010, 0.0
    %v1064 = vmax.f32 %v1012, 0.0
    %v1065 = vmax.f32 %v1014, 0.0
    %v1066 = vmax.f32 %v1018, 0.0
    %v1067 = vmax.f32 %v1020, 0.0
    %v1068 = vmax.f32 %v1022, 0.0
    %v1069 = vmax.f32 %v1024, 0.0
    %v1070 = vmax.f32 %v1028, 0.0
    %v1071 = vmax.f32 %v1030, 0.0
    %v1072 = vmax.f32 %v1032, 0.0
    %v1073 = vmax.f32 %v1034, 0.0
    %v1074 = vmax.f32 %v1038, 0.0
    %v1075 = vmax.f32 %v1040, 0.0
    %v1076 = vmax.f32 %v1042, 0.0
    %v1077 = vmax.f32 %v1044, 0.0
    %v1078 = vld [vmem:[%s7] sm:$0x3]
    %v1080 = vlaneseq
    %v1081 = vshrl.u32 %v1080, 7
    %v1082 = vsub.s32 0, %v1081
    %v1083 = vrot.slane %v1078, %v1082
    %v1084 = vlaneseq
    %v1085 = vshrl.u32 %v1084, 7
    %v1086 = vsub.s32 1, %v1085
    %v1087 = vrot.slane %v1078, %v1086
    %v1090 = vmul.f32 %v1046, %v1083
    %v1091 = vmul.f32 %v1047, %v1087
    %v1092 = vmul.f32 %v1048, %v1083
    %v1093 = vmul.f32 %v1049, %v1087
    %v1094 = vmul.f32 %v1050, %v1083
    %v1095 = vmul.f32 %v1051, %v1087
    %v1096 = vmul.f32 %v1052, %v1083
    %v1097 = vmul.f32 %v1053, %v1087
    %v1098 = vmul.f32 %v1054, %v1083
    %v1099 = vmul.f32 %v1055, %v1087
    %v1100 = vmul.f32 %v1056, %v1083
    %v1101 = vmul.f32 %v1057, %v1087
    %v1102 = vmul.f32 %v1058, %v1083
    %v1103 = vmul.f32 %v1059, %v1087
    %v1104 = vmul.f32 %v1060, %v1083
    %v1105 = vmul.f32 %v1061, %v1087
    %v1106 = vmul.f32 %v1062, %v1083
    %v1107 = vmul.f32 %v1063, %v1087
    %v1108 = vmul.f32 %v1064, %v1083
    %v1109 = vmul.f32 %v1065, %v1087
    %v1110 = vmul.f32 %v1066, %v1083
    %v1111 = vmul.f32 %v1067, %v1087
    %v1112 = vmul.f32 %v1068, %v1083
    %v1113 = vmul.f32 %v1069, %v1087
    %v1114 = vmul.f32 %v1070, %v1083
    %v1115 = vmul.f32 %v1071, %v1087
    %v1116 = vmul.f32 %v1072, %v1083
    %v1117 = vmul.f32 %v1073, %v1087
    %v1118 = vmul.f32 %v1074, %v1083
    %v1119 = vmul.f32 %v1075, %v1087
    %v1120 = vmul.f32 %v1076, %v1083
    %v1121 = vmul.f32 %v1077, %v1087
    %v1122 = vadd.f32 %v1090, %v1091
    %1123 = vadd.xlane.f32.xlu0 %v1122
    %v1124 = vpop.xlane.xlu0 %1123
    %v1125 = vadd.f32 %v1092, %v1093
    %1126 = vadd.xlane.f32.xlu0 %v1125
    %v1127 = vpop.xlane.xlu0 %1126
    %v1128 = vadd.f32 %v1094, %v1095
    %1129 = vadd.xlane.f32.xlu0 %v1128
    %v1130 = vpop.xlane.xlu0 %1129
    %v1131 = vadd.f32 %v1096, %v1097
    %1132 = vadd.xlane.f32.xlu0 %v1131
    %v1133 = vpop.xlane.xlu0 %1132
    %v1134 = vadd.f32 %v1098, %v1099
    %1135 = vadd.xlane.f32.xlu0 %v1134
    %v1136 = vpop.xlane.xlu0 %1135
    %v1137 = vadd.f32 %v1100, %v1101
    %1138 = vadd.xlane.f32.xlu0 %v1137
    %v1139 = vpop.xlane.xlu0 %1138
    %v1140 = vadd.f32 %v1102, %v1103
    %1141 = vadd.xlane.f32.xlu0 %v1140
    %v1142 = vpop.xlane.xlu0 %1141
    %v1143 = vadd.f32 %v1104, %v1105
    %1144 = vadd.xlane.f32.xlu0 %v1143
    %v1145 = vpop.xlane.xlu0 %1144
    %v1146 = vadd.f32 %v1106, %v1107
    %1147 = vadd.xlane.f32.xlu0 %v1146
    %v1148 = vpop.xlane.xlu0 %1147
    %v1149 = vadd.f32 %v1108, %v1109
    %1150 = vadd.xlane.f32.xlu0 %v1149
    %v1151 = vpop.xlane.xlu0 %1150
    %v1152 = vadd.f32 %v1110, %v1111
    %1153 = vadd.xlane.f32.xlu0 %v1152
    %v1154 = vpop.xlane.xlu0 %1153
    %v1155 = vadd.f32 %v1112, %v1113
    %1156 = vadd.xlane.f32.xlu0 %v1155
    %v1157 = vpop.xlane.xlu0 %1156
    %v1158 = vadd.f32 %v1114, %v1115
    %1159 = vadd.xlane.f32.xlu0 %v1158
    %v1160 = vpop.xlane.xlu0 %1159
    %v1161 = vadd.f32 %v1116, %v1117
    %1162 = vadd.xlane.f32.xlu0 %v1161
    %v1163 = vpop.xlane.xlu0 %1162
    %v1164 = vadd.f32 %v1118, %v1119
    %1165 = vadd.xlane.f32.xlu0 %v1164
    %v1166 = vpop.xlane.xlu0 %1165
    %v1167 = vadd.f32 %v1120, %v1121
    %1168 = vadd.xlane.f32.xlu0 %v1167
    %v1169 = vpop.xlane.xlu0 %1168
    %s1170 = sld [smem:[#allocation2]]
    %v1171 = vstv %s1170
    %v1172 = vadd.f32 %v1124, %v1171
    %v1173 = vadd.f32 %v1127, %v1171
    %v1174 = vadd.f32 %v1130, %v1171
    %v1175 = vadd.f32 %v1133, %v1171
    %v1176 = vadd.f32 %v1136, %v1171
    %v1177 = vadd.f32 %v1139, %v1171
    %v1178 = vadd.f32 %v1142, %v1171
    %v1179 = vadd.f32 %v1145, %v1171
    %v1180 = vadd.f32 %v1148, %v1171
    %v1181 = vadd.f32 %v1151, %v1171
    %v1182 = vadd.f32 %v1154, %v1171
    %v1183 = vadd.f32 %v1157, %v1171
    %v1184 = vadd.f32 %v1160, %v1171
    %v1185 = vadd.f32 %v1163, %v1171
    %v1186 = vadd.f32 %v1166, %v1171
    %v1187 = vadd.f32 %v1169, %v1171
    %v1204 = vlaneseq
    %v1205 = vand.u32 %v1204, 127
    %v1206 = vlaneseq
    %v1207 = vshrl.u32 %v1206, 7
    %v1208 = vsub.s32 %v1205, %v1207
    %v1209 = vrot.slane %v1172, %v1208
    %v1210 = vadd.s32 %v1205, 4294967288
    %v1211 = vlaneseq
    %v1212 = vshrl.u32 %v1211, 7
    %v1213 = vsub.s32 %v1210, %v1212
    %v1214 = vrot.slane %v1173, %v1213
    %vm1215 = vcmask 130112
    %v1216 = vsel %vm1215, %v1214, %v1209
    %v1217 = vadd.s32 %v1205, 4294967280
    %v1218 = vlaneseq
    %v1219 = vshrl.u32 %v1218, 7
    %v1220 = vsub.s32 %v1217, %v1219
    %v1221 = vrot.slane %v1174, %v1220
    %vm1222 = vcmask 195712
    %v1223 = vsel %vm1222, %v1221, %v1216
    %v1224 = vadd.s32 %v1205, 4294967272
    %v1225 = vlaneseq
    %v1226 = vshrl.u32 %v1225, 7
    %v1227 = vsub.s32 %v1224, %v1226
    %v1228 = vrot.slane %v1175, %v1227
    %vm1229 = vcmask 261312
    %v1230 = vsel %vm1229, %v1228, %v1223
    %v1231 = vadd.s32 %v1205, 4294967264
    %v1232 = vlaneseq
    %v1233 = vshrl.u32 %v1232, 7
    %v1234 = vsub.s32 %v1231, %v1233
    %v1235 = vrot.slane %v1176, %v1234
    %vm1236 = vcmask 326912
    %v1237 = vsel %vm1236, %v1235, %v1230
    %v1238 = vadd.s32 %v1205, 4294967256
    %v1239 = vlaneseq
    %v1240 = vshrl.u32 %v1239, 7
    %v1241 = vsub.s32 %v1238, %v1240
    %v1242 = vrot.slane %v1177, %v1241
    %vm1243 = vcmask 392512
    %v1244 = vsel %vm1243, %v1242, %v1237
    %v1245 = vadd.s32 %v1205, 4294967248
    %v1246 = vlaneseq
    %v1247 = vshrl.u32 %v1246, 7
    %v1248 = vsub.s32 %v1245, %v1247
    %v1249 = vrot.slane %v1178, %v1248
    %vm1250 = vcmask 458112
    %v1251 = vsel %vm1250, %v1249, %v1244
    %v1252 = vadd.s32 %v1205, 4294967240
    %v1253 = vlaneseq
    %v1254 = vshrl.u32 %v1253, 7
    %v1255 = vsub.s32 %v1252, %v1254
    %v1256 = vrot.slane %v1179, %v1255
    %vm1257 = vcmask 523712
    %v1258 = vsel %vm1257, %v1256, %v1251
    %v1259 = vadd.s32 %v1205, 4294967232
    %v1260 = vlaneseq
    %v1261 = vshrl.u32 %v1260, 7
    %v1262 = vsub.s32 %v1259, %v1261
    %v1263 = vrot.slane %v1180, %v1262
    %vm1264 = vcmask 589312
    %v1265 = vsel %vm1264, %v1263, %v1258
    %v1266 = vadd.s32 %v1205, 4294967224
    %v1267 = vlaneseq
    %v1268 = vshrl.u32 %v1267, 7
    %v1269 = vsub.s32 %v1266, %v1268
    %v1270 = vrot.slane %v1181, %v1269
    %vm1271 = vcmask 654912
    %v1272 = vsel %vm1271, %v1270, %v1265
    %v1273 = vadd.s32 %v1205, 4294967216
    %v1274 = vlaneseq
    %v1275 = vshrl.u32 %v1274, 7
    %v1276 = vsub.s32 %v1273, %v1275
    %v1277 = vrot.slane %v1182, %v1276
    %vm1278 = vcmask 720512
    %v1279 = vsel %vm1278, %v1277, %v1272
    %v1280 = vadd.s32 %v1205, 4294967208
    %v1281 = vlaneseq
    %v1282 = vshrl.u32 %v1281, 7
    %v1283 = vsub.s32 %v1280, %v1282
    %v1284 = vrot.slane %v1183, %v1283
    %vm1285 = vcmask 786112
    %v1286 = vsel %vm1285, %v1284, %v1279
    %v1287 = vadd.s32 %v1205, 4294967200
    %v1288 = vlaneseq
    %v1289 = vshrl.u32 %v1288, 7
    %v1290 = vsub.s32 %v1287, %v1289
    %v1291 = vrot.slane %v1184, %v1290
    %vm1292 = vcmask 851712
    %v1293 = vsel %vm1292, %v1291, %v1286
    %v1294 = vadd.s32 %v1205, 4294967192
    %v1295 = vlaneseq
    %v1296 = vshrl.u32 %v1295, 7
    %v1297 = vsub.s32 %v1294, %v1296
    %v1298 = vrot.slane %v1185, %v1297
    %vm1299 = vcmask 917312
    %v1300 = vsel %vm1299, %v1298, %v1293
    %v1301 = vadd.s32 %v1205, 4294967184
    %v1302 = vlaneseq
    %v1303 = vshrl.u32 %v1302, 7
    %v1304 = vsub.s32 %v1301, %v1303
    %v1305 = vrot.slane %v1186, %v1304
    %vm1306 = vcmask 982912
    %v1307 = vsel %vm1306, %v1305, %v1300
    %v1308 = vadd.s32 %v1205, 4294967176
    %v1309 = vlaneseq
    %v1310 = vshrl.u32 %v1309, 7
    %v1311 = vsub.s32 %v1308, %v1310
    %v1312 = vrot.slane %v1187, %v1311
    %vm1313 = vcmask 1048512
    %v1314 = vsel %vm1313, %v1312, %v1307
    %1316 = vst [vmem:[%s9] sm:$0x1] %v1314
    // Predicated region
    $region46: #{critic_forward.1} parent=1 // pred_check
      _
    $region47: #{critic_forward.1} parent=1 // pred_check_branch
      %1318 = sbr.rel (0) target = $region49
    $region48: #{critic_forward.1} parent=1 // pred_region
      _
    $region49: #{critic_forward.1} parent=1 // pred_fallthru
      _
    // Predicated region
    $region50: #{critic_forward.1} parent=1 // pred_check
      _
    $region51: #{critic_forward.1} parent=1 // pred_check_branch
      %1320 = sbr.rel (0) target = $region53
    $region52: #{critic_forward.1} parent=1 // pred_region
      _
    $region53: #{critic_forward.1} parent=1 // pred_fallthru
      _
    %1321 = vsyncpa [#allocation4], 1
    %1322 = vsyncpa [#allocation6], 1

</llo_original>
